<compile_context>
chip_gen: v7x
topology: tpu7x:2x2x1
jax: 0.10.0
libtpu: 0.0.40
codegen_flags: <defaults>
</compile_context>

<pallas_src>
import functools
import math

import jax
import jax.numpy as jnp
from jax.experimental import pallas as pl
from jax.experimental.pallas import tpu as pltpu


def _round_up(x, m):
    return ((x + m - 1) // m) * m


def _pick_tile_m(M, d, n, vmem_budget_bytes=8 << 20):
    """Rows per tile: double-buffered v/out f32 tiles plus the [TILE_M, n] intermediates
    must stay well under the scoped-VMEM default (32 MiB; v7x TC has only 64 MiB total)."""
    bytes_per_row = 4 * (4 * d + 4 * n)          # 2 tiles x 2 buffers x d f32 + ~4x n f32 temps
    t = max(8, min(2048, vmem_budget_bytes // bytes_per_row))
    t = (t // 8) * 8                             # f32 sublane multiple
    return int(min(t, _round_up(M, 8)))


def _vq_kernel(M, v_ref, cbt_ref, csq_ref, out_ref, idx_ref, loss_ref):
    v = v_ref[...]                    # [TM, d] f32
    cbt = cbt_ref[...]                # [d, n]  f32  (codebook, transposed, resident)
    csq = csq_ref[...]                # [1, n]  f32  (||c_j||^2, precomputed in wrapper)
    TM, d = v_ref.shape
    n = cbt_ref.shape[1]
    inv_d = 1.0 / d

    # --- distances (up to the constant ||v||^2 term) on the MXU: ||c||^2 - 2 v.c ---
    dist = csq - 2.0 * jnp.dot(v, cbt, preferred_element_type=jnp.float32)   # [TM, n]

    # --- argmin over entries 1..n-1 (entry 0 is the fixed empty feature), ---
    # --- first-occurrence tie-break (matches torch.argmin)                 ---
    col = jax.lax.broadcasted_iota(jnp.int32, (TM, n), 1)
    dist = jnp.where(col == 0, jnp.inf, dist)
    minv = jnp.min(dist, axis=-1, keepdims=True)
    idx_col = jnp.min(jnp.where(dist == minv, col, n), axis=-1, keepdims=True)  # [TM,1] in 1..n-1

    # --- rows that equal the empty feature [1/d, ..., 1/d] are forced to index 0 ---
    is_real = jnp.max((v != inv_d).astype(jnp.int32), axis=-1, keepdims=True)   # [TM,1]
    idx_col = jnp.where(is_real > 0, idx_col, 0)

    # --- gather codebook rows via one-hot matmul (MXU): out[m] = codebook[idx[m]] ---
    onehot = (col == idx_col).astype(jnp.float32)                               # [TM, n]
    out = jax.lax.dot_general(onehot, cbt, (((1,), (1,)), ((), ())),
                              preferred_element_type=jnp.float32)               # [TM, d]
    out_ref[...] = out

    # --- lane-dense idx row via a tiny MXU contraction (no masked [TM,1] stores) ---
    lane_ids = jax.lax.broadcasted_iota(jnp.int32, (1, n), 1).astype(jnp.float32)
    idx_row = jax.lax.dot_general(lane_ids, onehot, (((1,), (1,)), ((), ())),
                                  preferred_element_type=jnp.float32)           # [1, TM]
    idx_ref[...] = idx_row.astype(jnp.int32).reshape(1, 1, TM)

    # --- commitment-loss partial for this tile: sum((out - v)^2), padded rows masked ---
    row0 = pl.program_id(0) * TM
    rid = row0 + jax.lax.broadcasted_iota(jnp.int32, (TM, 1), 0)
    sq = (out - v) * (out - v)                                                  # [TM, d]
    rowsq = jnp.sum(sq, axis=-1, keepdims=True)                                 # [TM, 1]
    rowsq = jnp.where(rid < M, rowsq, 0.0)
    loss_ref[...] = jnp.sum(rowsq, axis=0, keepdims=True).reshape(1, 1, 1)


def init_codebook(key, n, d, softmax=True):
    """Deterministic stand-in for the PyTorch __init__:
    nn.Embedding weight ~ N(0,1) -> row 0 set to 1/d -> softmax over dim=1."""
    w = jax.random.normal(key, (n, d), dtype=jnp.float32)
    w = w.at[0].set(1.0 / d)           # set_empty_feature(0)
    if softmax:
        w = jax.nn.softmax(w, axis=1)  # row 0 (constant) stays 1/d
    return w


def vq_forward(v, codebook, tile_m=None):
    """Pallas-backed forward: returns (out, idx, loss, used) like VQ.forward (eval mode)."""
    *lead, d = v.shape
    n = codebook.shape[0]
    M = int(math.prod(lead)) if lead else 1
    v2d = v.reshape(M, d).astype(jnp.float32)
    cb = codebook.astype(jnp.float32)

    TILE_M = tile_m if tile_m is not None else _pick_tile_m(M, d, n)
    M_pad = _round_up(M, TILE_M)
    if M_pad != M:
        v2d = jnp.pad(v2d, ((0, M_pad - M), (0, 0)))
    num_tiles = M_pad // TILE_M

    # Hoisted codebook-dependent constants (computed once, outside the grid loop).
    cbt = cb.T                                       # [d, n]
    csq = jnp.sum(cb * cb, axis=1)[None, :]          # [1, n]

    out2d, idx3d, loss_part = pl.pallas_call(
        functools.partial(_vq_kernel, M),
        out_shape=(
            jax.ShapeDtypeStruct((M_pad, d), jnp.float32),
            jax.ShapeDtypeStruct((num_tiles, 1, TILE_M), jnp.int32),
            jax.ShapeDtypeStruct((num_tiles, 1, 1), jnp.float32),
        ),
        grid=(num_tiles,),
        in_specs=[
            pl.BlockSpec((TILE_M, d), lambda i: (i, 0)),   # pipelined v tiles
            pl.BlockSpec((d, n), lambda i: (0, 0)),        # resident codebook^T
            pl.BlockSpec((1, n), lambda i: (0, 0)),        # resident ||c||^2
        ],
        out_specs=(
            pl.BlockSpec((TILE_M, d), lambda i: (i, 0)),
            pl.BlockSpec((1, 1, TILE_M), lambda i: (i, 0, 0)),
            pl.BlockSpec((1, 1, 1), lambda i: (i, 0, 0)),
        ),
        compiler_params=pltpu.CompilerParams(
            dimension_semantics=("parallel",)),            # rows split across TCs on v7x
    )(v2d, cbt, csq)

    out = out2d[:M].reshape(*lead, d)
    idx = idx3d.reshape(-1)[:M].reshape(tuple(lead))       # torch returns int64; int32 here (x64 off)
    loss = jnp.sum(loss_part) / float(M * d)
    used = jnp.array([0], dtype=jnp.int32)                 # eval mode: usage pool is empty -> used = 0
    # TODO(synk): training-only branch (usage pool update, unused-code loss) not implemented.
    return out, idx, loss, used


def _vq_reference(v, codebook):
    """Pure-JAX reference mirroring the PyTorch forward (eval mode)."""
    n, d = codebook.shape
    diff = jnp.sum(jnp.square(v[..., None, :] - codebook[1:]), axis=-1)
    idx = jnp.argmin(diff, axis=-1) + 1
    mask = jnp.max(v != 1.0 / d, axis=-1)
    idx = jnp.where(mask, idx, 0)
    onehot = jax.nn.one_hot(idx, n, dtype=jnp.float32)
    out = jnp.einsum("...n,nd->...d", onehot, codebook)
    loss = jnp.mean(jnp.square(out - v))
    return out, idx, loss


if __name__ == "__main__":
    key = jax.random.PRNGKey(0)
    k_cb, k_v = jax.random.split(key)

    n, d = 16, 32          # codebook size, feature dim
    batch, seq = 2, 8      # v: [batch, seq, d]

    codebook = init_codebook(k_cb, n, d, softmax=True)

    v = jax.nn.softmax(jax.random.normal(k_v, (batch, seq, d), dtype=jnp.float32), axis=-1)
    # Pad a few positions with the exact empty feature [1/d, ..., 1/d] to exercise the mask.
    empty = jnp.full((d,), 1.0 / d, dtype=jnp.float32)
    v = v.at[0, -2:].set(empty)
    v = v.at[1, -1:].set(empty)

    out, idx, loss, used = vq_forward(v, codebook)
    jax.block_until_ready((out, idx, loss, used))

    # correctness check against a pure-JAX reference
    ref_out, ref_idx, ref_loss = _vq_reference(v, codebook)
    assert jnp.allclose(out, ref_out, atol=1e-5), "out mismatch"
    assert jnp.array_equal(idx.astype(jnp.int32), ref_idx.astype(jnp.int32)), "idx mismatch"
    assert jnp.allclose(loss, ref_loss, atol=1e-5), "loss mismatch"

    print("KERNEL_OK")
</pallas_src>

<mosaic_0001>
module attributes {stable_mosaic.version = 11 : i64} {
  func.func @_vq_kernel(%arg0: i32, %arg1: memref<16x32xf32, #tpu.memory_space<vmem>>, %arg2: memref<32x16xf32, #tpu.memory_space<vmem>>, %arg3: memref<1x16xf32, #tpu.memory_space<vmem>>, %arg4: memref<16x32xf32, #tpu.memory_space<vmem>>, %arg5: memref<1x1x16xi32, #tpu.memory_space<vmem>>, %arg6: memref<1x1x1xf32, #tpu.memory_space<vmem>>) attributes {dimension_semantics = [#tpu.dimension_semantics<parallel>], iteration_bounds = array<i64: 1>, scalar_prefetch = 0 : i64, scratch_operands = 0 : i64, tpu.core_type = #tpu.core_type<tc>, window_params = [{transform_indices = @transform_0, window_bounds = array<i64: 16, 32>}, {pipeline_mode = #tpu.pipeline_mode<synchronous>, transform_indices = @transform_1, window_bounds = array<i64: 32, 16>}, {pipeline_mode = #tpu.pipeline_mode<synchronous>, transform_indices = @transform_2, window_bounds = array<i64: 1, 16>}, {transform_indices = @transform_3, window_bounds = array<i64: 16, 32>}, {transform_indices = @transform_4, window_bounds = array<i64: 1, 1, 16>}, {transform_indices = @transform_5, window_bounds = array<i64: 1, 1, 1>}]} {
    %c0 = arith.constant 0 : index
    %c0_0 = arith.constant 0 : index
    %0 = vector.load %arg1[%c0, %c0_0] : memref<16x32xf32, #tpu.memory_space<vmem>>, vector<16x32xf32>
    %c0_1 = arith.constant 0 : index
    %c0_2 = arith.constant 0 : index
    %1 = vector.load %arg2[%c0_1, %c0_2] : memref<32x16xf32, #tpu.memory_space<vmem>>, vector<32x16xf32>
    %c0_3 = arith.constant 0 : index
    %c0_4 = arith.constant 0 : index
    %2 = vector.load %arg3[%c0_3, %c0_4] : memref<1x16xf32, #tpu.memory_space<vmem>>, vector<1x16xf32>
    %cst = arith.constant dense<0.000000e+00> : vector<16x16xf32>
    %3 = tpu.matmul %0, %1, %cst {dimension_numbers = #tpu.dot_dimension_numbers<[1], [0], [0], [1], [0, 0, 1, 1], [], []>} : vector<16x32xf32>, vector<32x16xf32>, vector<16x16xf32> -> vector<16x16xf32>
    %cst_5 = arith.constant 2.000000e+00 : f32
    %4 = vector.broadcast %cst_5 : f32 to vector<16x16xf32>
    %5 = arith.mulf %4, %3 : vector<16x16xf32>
    %6 = vector.broadcast %2 : vector<1x16xf32> to vector<16x16xf32>
    %7 = arith.subf %6, %5 : vector<16x16xf32>
    %8 = tpu.iota {dimensions = array<i32: 1>} : vector<16x16xi32>
    %c0_i32 = arith.constant 0 : i32
    %9 = vector.broadcast %c0_i32 : i32 to vector<16x16xi32>
    %10 = arith.cmpi eq, %8, %9 : vector<16x16xi32>
    %cst_6 = arith.constant 0x7F800000 : f32
    %11 = vector.broadcast %cst_6 : f32 to vector<16x16xf32>
    %12 = arith.select %10, %11, %7 : vector<16x16xi1>, vector<16x16xf32>
    %cst_7 = arith.constant dense<0x7F800000> : vector<16xf32>
    %13 = vector.multi_reduction <minimumf>, %12, %cst_7 [1] : vector<16x16xf32> to vector<16xf32>
    %14 = vector.shape_cast %13 : vector<16xf32> to vector<16x1xf32>
    %15 = vector.broadcast %14 : vector<16x1xf32> to vector<16x16xf32>
    %16 = arith.cmpf oeq, %12, %15 : vector<16x16xf32>
    %c16_i32 = arith.constant 16 : i32
    %17 = vector.broadcast %c16_i32 : i32 to vector<16x16xi32>
    %18 = arith.select %16, %8, %17 : vector<16x16xi1>, vector<16x16xi32>
    %cst_8 = arith.constant dense<2147483647> : vector<16xi32>
    %19 = vector.multi_reduction <minsi>, %18, %cst_8 [1] : vector<16x16xi32> to vector<16xi32>
    %20 = vector.shape_cast %19 : vector<16xi32> to vector<16x1xi32>
    %cst_9 = arith.constant 3.125000e-02 : f32
    %21 = vector.broadcast %cst_9 : f32 to vector<16x32xf32>
    %22 = arith.cmpf one, %0, %21 : vector<16x32xf32>
    %23 = arith.extui %22 : vector<16x32xi1> to vector<16x32xi32>
    %cst_10 = arith.constant dense<-2147483648> : vector<16xi32>
    %24 = vector.multi_reduction <maxsi>, %23, %cst_10 [1] : vector<16x32xi32> to vector<16xi32>
    %25 = vector.shape_cast %24 : vector<16xi32> to vector<16x1xi32>
    %c0_i32_11 = arith.constant 0 : i32
    %26 = vector.broadcast %c0_i32_11 : i32 to vector<16x1xi32>
    %27 = arith.cmpi sgt, %25, %26 : vector<16x1xi32>
    %c0_i32_12 = arith.constant 0 : i32
    %28 = vector.broadcast %c0_i32_12 : i32 to vector<16x1xi32>
    %29 = arith.select %27, %20, %28 : vector<16x1xi1>, vector<16x1xi32>
    %30 = vector.broadcast %29 : vector<16x1xi32> to vector<16x16xi32>
    %31 = arith.cmpi eq, %8, %30 : vector<16x16xi32>
    %32 = arith.extui %31 : vector<16x16xi1> to vector<16x16xi32>
    %33 = arith.sitofp %32 : vector<16x16xi32> to vector<16x16xf32>
    %cst_13 = arith.constant dense<0.000000e+00> : vector<16x32xf32>
    %34 = tpu.matmul %33, %1, %cst_13 {dimension_numbers = #tpu.dot_dimension_numbers<[1], [1], [0], [0], [0, 0, 1, 0], [], []>} : vector<16x16xf32>, vector<32x16xf32>, vector<16x32xf32> -> vector<16x32xf32>
    %c0_14 = arith.constant 0 : index
    %c0_15 = arith.constant 0 : index
    %35 = vector.load %arg4[%c0_14, %c0_15] : memref<16x32xf32, #tpu.memory_space<vmem>>, vector<16x32xf32>
    tpu.vector_store %arg4[%c0_14, %c0_15], %34 {strides = array<i32>} : memref<16x32xf32, #tpu.memory_space<vmem>>, vector<16x32xf32>,
    %36 = tpu.iota {dimensions = array<i32: 1>} : vector<1x16xi32>
    %37 = arith.sitofp %36 : vector<1x16xi32> to vector<1x16xf32>
    %cst_16 = arith.constant dense<0.000000e+00> : vector<1x16xf32>
    %38 = tpu.matmul %37, %33, %cst_16 {dimension_numbers = #tpu.dot_dimension_numbers<[1], [1], [0], [0], [0, 0, 1, 0], [], []>} : vector<1x16xf32>, vector<16x16xf32>, vector<1x16xf32> -> vector<1x16xf32>
    %39 = arith.fptosi %38 : vector<1x16xf32> to vector<1x16xi32>
    %40 = vector.shape_cast %39 : vector<1x16xi32> to vector<1x1x16xi32>
    %c0_17 = arith.constant 0 : index
    %c0_18 = arith.constant 0 : index
    %c0_19 = arith.constant 0 : index
    %41 = vector.load %arg5[%c0_17, %c0_18, %c0_19] : memref<1x1x16xi32, #tpu.memory_space<vmem>>, vector<1x1x16xi32>
    tpu.vector_store %arg5[%c0_17, %c0_18, %c0_19], %40 {strides = array<i32>} : memref<1x1x16xi32, #tpu.memory_space<vmem>>, vector<1x1x16xi32>,
    %c16_i32_20 = arith.constant 16 : i32
    %42 = arith.muli %arg0, %c16_i32_20 : i32
    %43 = tpu.iota {dimensions = array<i32: 0>} : vector<16x1xi32>
    %44 = vector.broadcast %42 : i32 to vector<16x1xi32>
    %45 = arith.addi %44, %43 : vector<16x1xi32>
    %46 = arith.subf %34, %0 : vector<16x32xf32>
    %47 = arith.subf %34, %0 : vector<16x32xf32>
    %48 = arith.mulf %46, %47 : vector<16x32xf32>
    %cst_21 = arith.constant dense<0.000000e+00> : vector<16xf32>
    %49 = vector.multi_reduction <add>, %48, %cst_21 [1] : vector<16x32xf32> to vector<16xf32>
    %50 = vector.shape_cast %49 : vector<16xf32> to vector<16x1xf32>
    %c16_i32_22 = arith.constant 16 : i32
    %51 = vector.broadcast %c16_i32_22 : i32 to vector<16x1xi32>
    %52 = arith.cmpi slt, %45, %51 : vector<16x1xi32>
    %cst_23 = arith.constant 0.000000e+00 : f32
    %53 = vector.broadcast %cst_23 : f32 to vector<16x1xf32>
    %54 = arith.select %52, %50, %53 : vector<16x1xi1>, vector<16x1xf32>
    %cst_24 = arith.constant dense<0.000000e+00> : vector<1xf32>
    %55 = vector.multi_reduction <add>, %54, %cst_24 [0] : vector<16x1xf32> to vector<1xf32>
    %56 = vector.shape_cast %55 : vector<1xf32> to vector<1x1xf32>
    %57 = vector.shape_cast %56 : vector<1x1xf32> to vector<1x1x1xf32>
    %c0_25 = arith.constant 0 : index
    %c0_26 = arith.constant 0 : index
    %c0_27 = arith.constant 0 : index
    %58 = vector.load %arg6[%c0_25, %c0_26, %c0_27] : memref<1x1x1xf32, #tpu.memory_space<vmem>>, vector<1x1x1xf32>
    tpu.vector_store %arg6[%c0_25, %c0_26, %c0_27], %57 {strides = array<i32>} : memref<1x1x1xf32, #tpu.memory_space<vmem>>, vector<1x1x1xf32>,
    return
  }
  func.func @transform_0(%arg0: i32) -> (i32, i32) {
    %c0_i32 = arith.constant 0 : i32
    %c0_i32_0 = arith.constant 0 : i32
    return %arg0, %c0_i32 : i32, i32
  }
  func.func @transform_1(%arg0: i32) -> (i32, i32) {
    %c0_i32 = arith.constant 0 : i32
    %c0_i32_0 = arith.constant 0 : i32
    %c0_i32_1 = arith.constant 0 : i32
    return %c0_i32, %c0_i32_0 : i32, i32
  }
  func.func @transform_2(%arg0: i32) -> (i32, i32) {
    %c0_i32 = arith.constant 0 : i32
    %c0_i32_0 = arith.constant 0 : i32
    %c0_i32_1 = arith.constant 0 : i32
    return %c0_i32, %c0_i32_0 : i32, i32
  }
  func.func @transform_3(%arg0: i32) -> (i32, i32) {
    %c0_i32 = arith.constant 0 : i32
    %c0_i32_0 = arith.constant 0 : i32
    return %arg0, %c0_i32 : i32, i32
  }
  func.func @transform_4(%arg0: i32) -> (i32, i32, i32) {
    %c0_i32 = arith.constant 0 : i32
    %c0_i32_0 = arith.constant 0 : i32
    %c0_i32_1 = arith.constant 0 : i32
    return %arg0, %c0_i32, %c0_i32_0 : i32, i32, i32
  }
  func.func @transform_5(%arg0: i32) -> (i32, i32, i32) {
    %c0_i32 = arith.constant 0 : i32
    %c0_i32_0 = arith.constant 0 : i32
    %c0_i32_1 = arith.constant 0 : i32
    return %arg0, %c0_i32, %c0_i32_0 : i32, i32, i32
  }
}

</mosaic_0001>

<llo_original>
// kernel: tpu_custom_call.1
$region0: #{tpu_custom_call.1}
  #allocation0 [shape = 'u32[]', space=smem, size = 0x4, offset = 0x4, fixed_abs, tag = 'smem constant byte address 0x4 - core index']
  #allocation1 [shape = 'u32[144,128]{1,0:T(1,128)}', space=vmem, size = 0x12000, scoped, tag = 'internal scratch']
  %s0 = inlined_call_operand.vmem [shape: f32[16,32], index: 0, kind: input, shape index: {}]
  %s1 = inlined_call_operand.vmem [shape: f32[32,16], index: 1, kind: input, shape index: {}]
  %s2 = inlined_call_operand.vmem [shape: f32[1,16], index: 2, kind: input, shape index: {}]
  %s3 = inlined_call_operand.hbm [shape: f32[16,32], index: 3, kind: output, shape index: {0}]
  %s4 = inlined_call_operand.hbm [shape: s32[1,1,16], index: 4, kind: output, shape index: {1}]
  %s5 = inlined_call_operand.hbm [shape: f32[1,1,1], index: 5, kind: output, shape index: {2}]
  %6 = xla_tuple %s3, %s4, %s5
  %s7 = sld [smem:[#allocation0]]
  $region38: #{tpu_custom_call.1} parent=0
    _
  %s9 = ssub.s32 1, %s7
  %s10 = scalar_select 0, %s9, %s7
  $region1: #{tpu_custom_call.1} parent=0
    #allocation2 [shape = 'u8[8192]{0}', space=vmem, size = 0x2000, scoped, tag = 'output window, operand 0, single buffered']
    #allocation3 [shape = 's32[1]{0}', space=sflag, size = 0x4, scoped, tag = 'scoped memory for tpu_custom_call.1']
    #allocation4 [shape = 'u8[512]{0}', space=vmem, size = 0x400, scoped, tag = 'output window, operand 1, single buffered']
    #allocation5 [shape = 's32[1]{0}', space=sflag, size = 0x4, scoped, tag = 'scoped memory for tpu_custom_call.1']
    #allocation6 [shape = 'u8[512]{0}', space=vmem, size = 0x400, scoped, tag = 'output window, operand 2, single buffered']
    %11 = vsyncpa [#allocation3], 0
    %12 = vsyncpa [#allocation5], 0
    // Predicated region
    $region2: #{tpu_custom_call.1} parent=1 // pred_check
      _
    $region3: #{tpu_custom_call.1} parent=1 // pred_check_branch
      %14 = sbr.rel (0) target = $region5
    $region4: #{tpu_custom_call.1} parent=1 // pred_region
      _
    $region5: #{tpu_custom_call.1} parent=1 // pred_fallthru
      _
    // Predicated region
    $region6: #{tpu_custom_call.1} parent=1 // pred_check
      _
    $region7: #{tpu_custom_call.1} parent=1 // pred_check_branch
      %16 = sbr.rel (0) target = $region9
    $region8: #{tpu_custom_call.1} parent=1 // pred_region
      _
    $region9: #{tpu_custom_call.1} parent=1 // pred_fallthru
      _
    // Predicated region
    $region10: #{tpu_custom_call.1} parent=1 // pred_check
      _
    $region11: #{tpu_custom_call.1} parent=1 // pred_check_branch
      %18 = sbr.rel (0) target = $region13
    $region12: #{tpu_custom_call.1} parent=1 // pred_region
      _
    $region13: #{tpu_custom_call.1} parent=1 // pred_fallthru
      _
    %v19 = vld [vmem:[%s0] sm:$0xff]
    %v20 = vld [vmem:[%s0 + $0x8] sm:$0xff]
    %v21 = vld [vmem:[%s1] sm:$0xff]
    %v22 = vld [vmem:[%s1 + $0x8] sm:$0xff]
    %v23 = vld [vmem:[%s1 + $0x10] sm:$0xff]
    %v24 = vld [vmem:[%s1 + $0x18] sm:$0xff]
    %v25 = vld [vmem:[%s2] sm:$0x1]
    %vm26 = vcmask 261120
    %v28 = vsel %vm26, %v19, 0
    %v31 = vsel %vm26, %v20, 0
    %33 = vmatprep.subr.mxu0 0.0
    %34 = vmatpush1.msra.mxu0 %v21
    %35 = vmatprep.subr.mxu0 0.0
    %36 = vmatpush1.msra.mxu0 %v22
    %37 = vmatprep.subr.mxu0 0.0
    %38 = vmatpush1.msra.mxu0 %v23
    %39 = vmatprep.subr.mxu0 0.0
    %40 = vmatpush1.msra.mxu0 %v24
    %41 = vmatprep.subr.mxu0 0.0
    %42 = vmatpush1.msra.mxu0 0.0
    %43 = vmatprep.subr.mxu0 0.0
    %44 = vmatpush1.msra.mxu0 0.0
    %45 = vmatprep.subr.mxu0 0.0
    %46 = vmatpush1.msra.mxu0 0.0
    %47 = vmatprep.subr.mxu0 0.0
    %48 = vmatpush1.msra.mxu0 0.0
    %49 = vmatprep.subr.mxu0 0.0
    %50 = vmatpush1.msra.mxu0 0.0
    %51 = vmatprep.subr.mxu0 0.0
    %52 = vmatpush1.msra.mxu0 0.0
    %53 = vmatprep.subr.mxu0 0.0
    %54 = vmatpush1.msra.mxu0 0.0
    %55 = vmatprep.subr.mxu0 0.0
    %56 = vmatpush1.msra.mxu0 0.0
    %57 = vmatprep.subr.mxu0 0.0
    %58 = vmatpush1.msra.mxu0 0.0
    %59 = vmatprep.subr.mxu0 0.0
    %60 = vmatpush1.msra.mxu0 0.0
    %61 = vmatprep.subr.mxu0 0.0
    %62 = vmatpush1.msra.mxu0 0.0
    %63 = vmatprep.subr.mxu0 0.0
    %64 = vmatpush1.msra.mxu0 0.0
    %65 = vmatprep.subr.mxu0 0.0
    %66 = vmatpush1.msra.mxu0 0.0
    %67 = vmatprep.subr.mxu0 0.0
    %68 = vmatpush1.msra.mxu0 0.0
    %69 = vmatprep.subr.mxu0 0.0
    %70 = vmatpush1.msra.mxu0 0.0
    %71 = vmatprep.subr.mxu0 0.0
    %72 = vmatpush1.msra.mxu0 0.0
    %73 = vmatprep.subr.mxu0 0.0
    %74 = vmatpush1.msra.mxu0 0.0
    %75 = vmatprep.subr.mxu0 0.0
    %76 = vmatpush1.msra.mxu0 0.0
    %77 = vmatprep.subr.mxu0 0.0
    %78 = vmatpush1.msra.mxu0 0.0
    %79 = vmatprep.subr.mxu0 0.0
    %80 = vmatpush1.msra.mxu0 0.0
    %81 = vmatprep.subr.mxu0 0.0
    %82 = vmatpush1.msra.mxu0 0.0
    %83 = vmatprep.subr.mxu0 0.0
    %84 = vmatpush1.msra.mxu0 0.0
    %85 = vmatprep.subr.mxu0 0.0
    %86 = vmatpush1.msra.mxu0 0.0
    %87 = vmatprep.subr.mxu0 0.0
    %88 = vmatpush1.msra.mxu0 0.0
    %89 = vmatprep.subr.mxu0 0.0
    %90 = vmatpush1.msra.mxu0 0.0
    %91 = vmatprep.subr.mxu0 0.0
    %92 = vmatpush1.msra.mxu0 0.0
    %93 = vmatprep.subr.mxu0 0.0
    %94 = vmatpush1.msra.mxu0 0.0
    %95 = vmatprep.subr.mxu0 0.0
    %96 = vmatpush1.msra.mxu0 0.0
    %97 = vmatprep.mubr.f32.mxu0 0.0
    %98 = vmatmul.mubr.f32.gmra.mrb[0].mxu0 %v28
    %v99 = vpop.f32.mrb[0].mxu0
    %v100 = vadd.f32 0.0, %v99
    %v101 = vpop.f32.mrb[0].mxu0
    %102 = vmatprep.mubr.f32.mxu0 0.0
    %103 = vmatmul.mubr.f32.gmra.mrb[0].mxu0 %v31
    %v104 = vpop.f32.mrb[0].mxu0
    %v105 = vadd.f32 0.0, %v104
    %v106 = vpop.f32.mrb[0].mxu0
    %107 = vdwg.mxu0
    %v108 = vmul.f32 %v100, 2.0
    %v109 = vmul.f32 %v105, 2.0
    %v111 = vlaneseq
    %v112 = vshrl.u32 %v111, 7
    %v113 = vsub.s32 0, %v112
    %v114 = vrot.slane %v25, %v113
    %v116 = vsub.f32 %v114, %v108
    %v117 = vsub.f32 %v114, %v109
    %v118 = vlaneseq
    %v119 = vand.u32 %v118, 127
    %vm120 = vcmp.eq.s32.totalorder %v119, 0
    %v121 = vsel %vm120, inf, %v116
    %v122 = vsel %vm120, inf, %v117
    %vm123 = vcmask 130048
    %v124 = vsel %vm123, %v121, inf
    %125 = vmin.xlane.f32.xlu0 %v124
    %v126 = vpop.xlane.xlu0 %125
    %v127 = vsel %vm123, %v122, inf
    %128 = vmin.xlane.f32.xlu0 %v127
    %v129 = vpop.xlane.xlu0 %128
    %vm130 = vcmp.eq.f32.partialorder %v121, %v126
    %vm131 = vcmp.eq.f32.partialorder %v122, %v129
    %v132 = vsel %vm130, %v119, 16
    %v133 = vsel %vm131, %v119, 16
    %v134 = vsel %vm123, %v132, 2147483647
    %v135 = vand.u32 %v134, 65535
    %v136 = vshra.s32 %v134, 16
    %v137 = vcvt.s32.f32 %v135
    %v138 = vcvt.s32.f32 %v136
    %139 = vmin.xlane.f32.xlu0 %v138
    %v140 = vpop.xlane.xlu0 %139
    %vm141 = vcmp.eq.f32.partialorder %v138, %v140
    %v142 = vsel %vm141, %v137, inf
    %143 = vmin.xlane.f32.xlu0 %v142
    %v144 = vpop.xlane.xlu0 %143
    %v145 = vcvt.f32.s32 %v144
    %v146 = vcvt.f32.s32 %v140
    %v147 = vshll.u32 %v146, 16
    %v148 = vadd.s32 %v147, %v145
    %v149 = vsel %vm123, %v133, 2147483647
    %v150 = vand.u32 %v149, 65535
    %v151 = vshra.s32 %v149, 16
    %v152 = vcvt.s32.f32 %v150
    %v153 = vcvt.s32.f32 %v151
    %154 = vmin.xlane.f32.xlu0 %v153
    %v155 = vpop.xlane.xlu0 %154
    %vm156 = vcmp.eq.f32.partialorder %v153, %v155
    %v157 = vsel %vm156, %v152, inf
    %158 = vmin.xlane.f32.xlu0 %v157
    %v159 = vpop.xlane.xlu0 %158
    %v160 = vcvt.f32.s32 %v159
    %v161 = vcvt.f32.s32 %v155
    %v162 = vshll.u32 %v161, 16
    %v163 = vadd.s32 %v162, %v160
    %vm164 = vcmp.ne.f32.partialorder %v19, 0.03125
    %vm165 = vcmp.ne.f32.partialorder %v20, 0.03125
    %v166 = vsel %vm164, 1, 0
    %v167 = vsel %vm165, 1, 0
    %v168 = vsel %vm26, %v166, 2147483648
    %v169 = vand.u32 %v168, 65535
    %v170 = vshra.s32 %v168, 16
    %v171 = vcvt.s32.f32 %v169
    %v172 = vcvt.s32.f32 %v170
    %173 = vmax.xlane.f32.xlu0 %v172
    %v174 = vpop.xlane.xlu0 %173
    %vm175 = vcmp.eq.f32.partialorder %v172, %v174
    %v176 = vsel %vm175, %v171, -inf
    %177 = vmax.xlane.f32.xlu0 %v176
    %v178 = vpop.xlane.xlu0 %177
    %v179 = vcvt.f32.s32 %v178
    %v180 = vcvt.f32.s32 %v174
    %v181 = vshll.u32 %v180, 16
    %v182 = vadd.s32 %v181, %v179
    %v183 = vsel %vm26, %v167, 2147483648
    %v184 = vand.u32 %v183, 65535
    %v185 = vshra.s32 %v183, 16
    %v186 = vcvt.s32.f32 %v184
    %v187 = vcvt.s32.f32 %v185
    %188 = vmax.xlane.f32.xlu0 %v187
    %v189 = vpop.xlane.xlu0 %188
    %vm190 = vcmp.eq.f32.partialorder %v187, %v189
    %v191 = vsel %vm190, %v186, -inf
    %192 = vmax.xlane.f32.xlu0 %v191
    %v193 = vpop.xlane.xlu0 %192
    %v194 = vcvt.f32.s32 %v193
    %v195 = vcvt.f32.s32 %v189
    %v196 = vshll.u32 %v195, 16
    %v197 = vadd.s32 %v196, %v194
    %vm198 = vcmp.gt.s32.totalorder %v182, 0
    %vm199 = vcmp.gt.s32.totalorder %v197, 0
    %v200 = vsel %vm198, %v148, 0
    %v201 = vsel %vm199, %v163, 0
    %vm202 = vcmp.eq.s32.totalorder %v119, %v200
    %vm203 = vcmp.eq.s32.totalorder %v119, %v201
    %v204 = vsel %vm202, 1, 0
    %v205 = vsel %vm203, 1, 0
    %v206 = vcvt.s32.f32 %v204
    %v207 = vcvt.s32.f32 %v205
    %v209 = vsel %vm123, %v206, 0
    %v212 = vsel %vm123, %v207, 0
    %v215 = vsel %vm123, %v21, 0
    %v218 = vsel %vm123, %v22, 0
    %v221 = vsel %vm123, %v23, 0
    %v224 = vsel %vm123, %v24, 0
    %226 = vmatprep.subr.mxu0 0.0
    %227 = vmatpush1.xpose.msra.mxu0 %v215
    %228 = vmatprep.subr.mxu0 0.0
    %229 = vmatpush1.xpose.msra.mxu0 %v218
    %230 = vmatprep.subr.mxu0 0.0
    %231 = vmatpush1.xpose.msra.mxu0 %v221
    %232 = vmatprep.subr.mxu0 0.0
    %233 = vmatpush1.xpose.msra.mxu0 %v224
    %234 = vmatprep.subr.mxu0 0.0
    %235 = vmatpush1.xpose.msra.mxu0 0.0
    %236 = vmatprep.subr.mxu0 0.0
    %237 = vmatpush1.xpose.msra.mxu0 0.0
    %238 = vmatprep.subr.mxu0 0.0
    %239 = vmatpush1.xpose.msra.mxu0 0.0
    %240 = vmatprep.subr.mxu0 0.0
    %241 = vmatpush1.xpose.msra.mxu0 0.0
    %242 = vmatprep.subr.mxu0 0.0
    %243 = vmatpush1.xpose.msra.mxu0 0.0
    %244 = vmatprep.subr.mxu0 0.0
    %245 = vmatpush1.xpose.msra.mxu0 0.0
    %246 = vmatprep.subr.mxu0 0.0
    %247 = vmatpush1.xpose.msra.mxu0 0.0
    %248 = vmatprep.subr.mxu0 0.0
    %249 = vmatpush1.xpose.msra.mxu0 0.0
    %250 = vmatprep.subr.mxu0 0.0
    %251 = vmatpush1.xpose.msra.mxu0 0.0
    %252 = vmatprep.subr.mxu0 0.0
    %253 = vmatpush1.xpose.msra.mxu0 0.0
    %254 = vmatprep.subr.mxu0 0.0
    %255 = vmatpush1.xpose.msra.mxu0 0.0
    %256 = vmatprep.subr.mxu0 0.0
    %257 = vmatpush1.xpose.msra.mxu0 0.0
    %258 = vmatprep.subr.mxu0 0.0
    %259 = vmatpush1.xpose.msra.mxu0 0.0
    %260 = vmatprep.subr.mxu0 0.0
    %261 = vmatpush1.xpose.msra.mxu0 0.0
    %262 = vmatprep.subr.mxu0 0.0
    %263 = vmatpush1.xpose.msra.mxu0 0.0
    %264 = vmatprep.subr.mxu0 0.0
    %265 = vmatpush1.xpose.msra.mxu0 0.0
    %266 = vmatprep.subr.mxu0 0.0
    %267 = vmatpush1.xpose.msra.mxu0 0.0
    %268 = vmatprep.subr.mxu0 0.0
    %269 = vmatpush1.xpose.msra.mxu0 0.0
    %270 = vmatprep.subr.mxu0 0.0
    %271 = vmatpush1.xpose.msra.mxu0 0.0
    %272 = vmatprep.subr.mxu0 0.0
    %273 = vmatpush1.xpose.msra.mxu0 0.0
    %274 = vmatprep.subr.mxu0 0.0
    %275 = vmatpush1.xpose.msra.mxu0 0.0
    %276 = vmatprep.subr.mxu0 0.0
    %277 = vmatpush1.xpose.msra.mxu0 0.0
    %278 = vmatprep.subr.mxu0 0.0
    %279 = vmatpush1.xpose.msra.mxu0 0.0
    %280 = vmatprep.subr.mxu0 0.0
    %281 = vmatpush1.xpose.msra.mxu0 0.0
    %282 = vmatprep.subr.mxu0 0.0
    %283 = vmatpush1.xpose.msra.mxu0 0.0
    %284 = vmatprep.subr.mxu0 0.0
    %285 = vmatpush1.xpose.msra.mxu0 0.0
    %286 = vmatprep.subr.mxu0 0.0
    %287 = vmatpush1.xpose.msra.mxu0 0.0
    %288 = vmatprep.subr.mxu0 0.0
    %289 = vmatpush1.xpose.msra.mxu0 0.0
    %290 = vmatprep.mubr.f32.mxu0 0.0
    %291 = vmatmul.mubr.f32.gmra.mrb[0].mxu0 %v209
    %v292 = vpop.f32.mrb[0].mxu0
    %v293 = vadd.f32 0.0, %v292
    %v294 = vpop.f32.mrb[0].mxu0
    %295 = vmatprep.mubr.f32.mxu0 0.0
    %296 = vmatmul.mubr.f32.gmra.mrb[0].mxu0 %v212
    %v297 = vpop.f32.mrb[0].mxu0
    %v298 = vadd.f32 0.0, %v297
    %v299 = vpop.f32.mrb[0].mxu0
    %300 = vdwg.mxu0
    %301 = vst.msk [vmem:[#allocation2] sm:$0xff] %vm26, %v293
    %302 = vst.msk [vmem:[#allocation2 + $0x8] sm:$0xff] %vm26, %v298
    %v303 = vcvt.s32.f32 %v119
    %v305 = vsel %vm123, %v303, 0
    %307 = vmatprep.subr.mxu0 0.0
    %308 = vmatpush1.xpose.msra.mxu0 %v209
    %309 = vmatprep.subr.mxu0 0.0
    %310 = vmatpush1.xpose.msra.mxu0 %v212
    %311 = vmatprep.subr.mxu0 0.0
    %312 = vmatpush1.xpose.msra.mxu0 0.0
    %313 = vmatprep.subr.mxu0 0.0
    %314 = vmatpush1.xpose.msra.mxu0 0.0
    %315 = vmatprep.subr.mxu0 0.0
    %316 = vmatpush1.xpose.msra.mxu0 0.0
    %317 = vmatprep.subr.mxu0 0.0
    %318 = vmatpush1.xpose.msra.mxu0 0.0
    %319 = vmatprep.subr.mxu0 0.0
    %320 = vmatpush1.xpose.msra.mxu0 0.0
    %321 = vmatprep.subr.mxu0 0.0
    %322 = vmatpush1.xpose.msra.mxu0 0.0
    %323 = vmatprep.subr.mxu0 0.0
    %324 = vmatpush1.xpose.msra.mxu0 0.0
    %325 = vmatprep.subr.mxu0 0.0
    %326 = vmatpush1.xpose.msra.mxu0 0.0
    %327 = vmatprep.subr.mxu0 0.0
    %328 = vmatpush1.xpose.msra.mxu0 0.0
    %329 = vmatprep.subr.mxu0 0.0
    %330 = vmatpush1.xpose.msra.mxu0 0.0
    %331 = vmatprep.subr.mxu0 0.0
    %332 = vmatpush1.xpose.msra.mxu0 0.0
    %333 = vmatprep.subr.mxu0 0.0
    %334 = vmatpush1.xpose.msra.mxu0 0.0
    %335 = vmatprep.subr.mxu0 0.0
    %336 = vmatpush1.xpose.msra.mxu0 0.0
    %337 = vmatprep.subr.mxu0 0.0
    %338 = vmatpush1.xpose.msra.mxu0 0.0
    %339 = vmatprep.subr.mxu0 0.0
    %340 = vmatpush1.xpose.msra.mxu0 0.0
    %341 = vmatprep.subr.mxu0 0.0
    %342 = vmatpush1.xpose.msra.mxu0 0.0
    %343 = vmatprep.subr.mxu0 0.0
    %344 = vmatpush1.xpose.msra.mxu0 0.0
    %345 = vmatprep.subr.mxu0 0.0
    %346 = vmatpush1.xpose.msra.mxu0 0.0
    %347 = vmatprep.subr.mxu0 0.0
    %348 = vmatpush1.xpose.msra.mxu0 0.0
    %349 = vmatprep.subr.mxu0 0.0
    %350 = vmatpush1.xpose.msra.mxu0 0.0
    %351 = vmatprep.subr.mxu0 0.0
    %352 = vmatpush1.xpose.msra.mxu0 0.0
    %353 = vmatprep.subr.mxu0 0.0
    %354 = vmatpush1.xpose.msra.mxu0 0.0
    %355 = vmatprep.subr.mxu0 0.0
    %356 = vmatpush1.xpose.msra.mxu0 0.0
    %357 = vmatprep.subr.mxu0 0.0
    %358 = vmatpush1.xpose.msra.mxu0 0.0
    %359 = vmatprep.subr.mxu0 0.0
    %360 = vmatpush1.xpose.msra.mxu0 0.0
    %361 = vmatprep.subr.mxu0 0.0
    %362 = vmatpush1.xpose.msra.mxu0 0.0
    %363 = vmatprep.subr.mxu0 0.0
    %364 = vmatpush1.xpose.msra.mxu0 0.0
    %365 = vmatprep.subr.mxu0 0.0
    %366 = vmatpush1.xpose.msra.mxu0 0.0
    %367 = vmatprep.subr.mxu0 0.0
    %368 = vmatpush1.xpose.msra.mxu0 0.0
    %369 = vmatprep.subr.mxu0 0.0
    %370 = vmatpush1.xpose.msra.mxu0 0.0
    %371 = vmatprep.mubr.f32.mxu0 0.0
    %372 = vmatmul.mubr.f32.gmra.mrb[0].mxu0 %v305
    %v373 = vpop.f32.mrb[0].mxu0
    %v374 = vadd.f32 0.0, %v373
    %v375 = vpop.f32.mrb[0].mxu0
    %376 = vdwg.mxu0
    %v377 = vcvt.f32.s32.to.zero.pseudo %v374
    %vm378 = vcmask 122880
    %379 = vst.msk [vmem:[#allocation4] sm:$0x1] %vm378, %v377
    %s380 = smul.u32 0, 16
    %v381 = vlaneseq
    %v382 = vshrl.u32 %v381, 7
    %v383 = vadd.s32 %v382, 8
    %v384 = vstv %s380
    %v385 = vadd.s32 %v384, %v382
    %v386 = vadd.s32 %v384, %v383
    %v387 = vsub.f32 %v293, %v19
    %v388 = vsub.f32 %v298, %v20
    %v389 = vmul.f32 %v387, %v387
    %v390 = vmul.f32 %v388, %v388
    %v391 = vsel %vm26, %v389, 0.0
    %392 = vadd.xlane.f32.xlu0 %v391
    %v393 = vpop.xlane.xlu0 %392
    %v394 = vsel %vm26, %v390, 0.0
    %395 = vadd.xlane.f32.xlu0 %v394
    %v396 = vpop.xlane.xlu0 %395
    %vm397 = vcmp.lt.s32.totalorder %v385, 16
    %vm398 = vcmp.lt.s32.totalorder %v386, 16
    %v399 = vsel %vm397, %v393, 0.0
    %v400 = vsel %vm398, %v396, 0.0
    %v401 = vadd.f32 %v399, %v400
    %v402 = vrot.slane %v401, 4
    %v403 = vadd.f32 %v401, %v402
    %v404 = vrot.slane %v403, 2
    %v405 = vadd.f32 %v403, %v404
    %v406 = vrot.slane %v405, 1
    %v407 = vadd.f32 %v405, %v406
    %vm408 = vcmask 0
    %409 = vst.msk [vmem:[#allocation6] sm:$0x1] %vm408, %v407
    // Predicated region
    $region14: #{tpu_custom_call.1} parent=1 // pred_check
      _
    $region15: #{tpu_custom_call.1} parent=1 // pred_check_branch
      %411 = sbr.rel (0) target = $region17
    $region16: #{tpu_custom_call.1} parent=1 // pred_region
      %s413 = ssub.s32 256, 256
      %414 = vsyncadd [#allocation3], %s413
      %s415 = sshll.u32 [#allocation2], 4
      %s416 = int_to_ptr.vmem [resolvable:$true] %s415
      %421 = dma.vmem_to_hbm [thread:$0]  %s416, 256, %s3, [#allocation3], 128, 128, 8
    $region17: #{tpu_custom_call.1} parent=1 // pred_fallthru
      _
    // Predicated region
    $region18: #{tpu_custom_call.1} parent=1 // pred_check
      _
    $region19: #{tpu_custom_call.1} parent=1 // pred_check_branch
      %423 = sbr.rel (0) target = $region21
    $region20: #{tpu_custom_call.1} parent=1 // pred_region
      %s425 = ssub.s32 16, 16
      %426 = vsyncadd [#allocation5], %s425
      %s428 = sshll.u32 [#allocation4], 4
      %s429 = int_to_ptr.vmem [resolvable:$true] %s428
      %431 = dma.vmem_to_hbm [thread:$0]  %s429, 16, %s4, [#allocation5]
    $region21: #{tpu_custom_call.1} parent=1 // pred_fallthru
      _
    // Predicated region
    $region22: #{tpu_custom_call.1} parent=1 // pred_check
      _
    $region23: #{tpu_custom_call.1} parent=1 // pred_check_branch
      %433 = sbr.rel (0) target = $region25
    $region24: #{tpu_custom_call.1} parent=1 // pred_region
      %s435 = ssub.s32 16, 16
      %436 = vsyncadd [#allocation5], %s435
      %s438 = sshll.u32 [#allocation6], 4
      %s439 = int_to_ptr.vmem [resolvable:$true] %s438
      %441 = dma.vmem_to_hbm [thread:$0]  %s439, 16, %s5, [#allocation5]
    $region25: #{tpu_custom_call.1} parent=1 // pred_fallthru
      _
    // Predicated region
    $region26: #{tpu_custom_call.1} parent=1 // pred_check
      _
    $region27: #{tpu_custom_call.1} parent=1 // pred_check_branch
      %443 = sbr.rel (0) target = $region29
    $region28: #{tpu_custom_call.1} parent=1 // pred_region
      %444 = dma.done [#allocation3], 256
    $region29: #{tpu_custom_call.1} parent=1 // pred_fallthru
      _
    // Predicated region
    $region30: #{tpu_custom_call.1} parent=1 // pred_check
      _
    $region31: #{tpu_custom_call.1} parent=1 // pred_check_branch
      %446 = sbr.rel (0) target = $region33
    $region32: #{tpu_custom_call.1} parent=1 // pred_region
      %447 = dma.done [#allocation5], 16
    $region33: #{tpu_custom_call.1} parent=1 // pred_fallthru
      _
    // Predicated region
    $region34: #{tpu_custom_call.1} parent=1 // pred_check
      _
    $region35: #{tpu_custom_call.1} parent=1 // pred_check_branch
      %449 = sbr.rel (0) target = $region37
    $region36: #{tpu_custom_call.1} parent=1 // pred_region
      %450 = dma.done [#allocation5], 16
    $region37: #{tpu_custom_call.1} parent=1 // pred_fallthru
      _
    %451 = vsyncpa [#allocation3], 1
    %452 = vsyncpa [#allocation5], 1

</llo_original>
